<compile_context>
chip_gen: v6e
topology: v6e:2x2x1
jax: 0.10.0
libtpu: 0.0.40
codegen_flags: <defaults>
</compile_context>

<pallas_src>
import functools

import jax
import jax.numpy as jnp
from jax import lax
from jax.experimental import pallas as pl
from jax.experimental.pallas import tpu as pltpu

_EPS = 1e-8          # same eps as torch.nn.functional.cosine_similarity
_EPS2 = _EPS * _EPS
_LANE = 128


def _cosine_distance_kernel(x_ref, y_ref, o_ref):
    # x_ref / y_ref: (tile_n, D) tiles in VMEM; o_ref: (1, tile_n) lane-dense.
    x = x_ref[...].astype(jnp.float32)
    y = y_ref[...].astype(jnp.float32)
    ones_row = jnp.ones((1, x.shape[1]), jnp.float32)          # (1, D)

    def row_sums_lane(prod):
        # (1, D) . (tile_n, D)^T -> (1, tile_n): per-row reduction emitted
        # directly in the lane orientation (MXU; idle in this kernel).
        return lax.dot_general(
            ones_row, prod, (((1,), (1,)), ((), ())),
            precision=lax.Precision.HIGHEST,
            preferred_element_type=jnp.float32)

    s_xy = row_sums_lane(x * y)                                 # (1, tile_n)
    s_xx = row_sums_lane(x * x)
    s_yy = row_sums_lane(y * y)

    # 1 - dot / (max(||x||, eps) * max(||y||, eps)); rsqrt runs on the EUP.
    inv = (lax.rsqrt(jnp.maximum(s_xx, jnp.float32(_EPS2))) *
           lax.rsqrt(jnp.maximum(s_yy, jnp.float32(_EPS2))))
    o_ref[...] = (1.0 - s_xy * inv).astype(o_ref.dtype)


def _vmem_capacity_bytes():
    """Generation-aware physical VMEM query."""
    try:
        cap = int(pltpu.get_tpu_info().vmem_capacity_bytes)
        if cap > 0:
            return cap
    except Exception:
        pass
    try:
        kind = jax.devices()[0].device_kind.lower()
        if "v7" in kind:
            return 64 * 1024 * 1024       # v7x: 64 MiB per TensorCore
    except Exception:
        pass
    return 128 * 1024 * 1024              # v5e / v6e


def _select_tiling(n_rows, d, itemsize):
    """Pick (tile_n, vmem_limit_bytes) from a generation-aware VMEM budget."""
    vmem_cap = _vmem_capacity_bytes()

    # Working-set target ~= 1/3 of physical VMEM.  Per row:
    #   2 inputs x 2 pipeline buffers            -> 4 * d * itemsize
    #   compiler-materialised f32 temporaries    -> ~4 * d * 4   (x*y, x*x, y*y + slack)
    #   lane-dense f32 output (double-buffered)  -> 8
    budget = vmem_cap // 3
    per_row = 4 * d * itemsize + 4 * d * 4 + 8
    tile_n = max(_LANE, (budget // per_row) // _LANE * _LANE)

    # Keep several grid steps when N allows it, so the "parallel" axis can be
    # sharded across TensorCores (v7x has 2) and pipelining has work to hide.
    if n_rows >= 2 * _LANE:
        target = max(_LANE, (n_rows // 8) // _LANE * _LANE)
        tile_n = min(tile_n, target)
    tile_n = min(tile_n, 16384)

    vmem_limit = int(min(vmem_cap * 3 // 4, max(32 * 1024 * 1024, budget * 2)))
    return tile_n, vmem_limit


@functools.partial(jax.jit, static_argnames=("tile_n",))
def full_pair_comparer_cosine(emb1, emb2, tile_n=None):
    """1 - cosine_similarity(emb1, emb2, dim=1). emb*: (N, D) -> (N,) float32."""
    assert emb1.shape == emb2.shape and emb1.ndim == 2
    N, D = emb1.shape
    itemsize = jnp.dtype(emb1.dtype).itemsize

    auto_tile, vmem_limit = _select_tiling(N, D, itemsize)
    if tile_n is None:
        tile_n = auto_tile
    else:
        # Lane-dense output blocks need tile_n to be a multiple of 128
        # whenever the grid has more than one step.
        tile_n = max(_LANE, (int(tile_n) + _LANE - 1) // _LANE * _LANE)

    if tile_n >= N:
        # Single block covering every row: block dims == array dims, so there
        # is no (8,128) divisibility requirement and no ragged tail.
        tile_n = N
        num_tiles = 1
    else:
        num_tiles = pl.cdiv(N, tile_n)

    # Only the OUTPUT is padded (num_tiles*tile_n floats, trivial); the inputs
    # are never copied or padded.  The last (ragged) input block reads garbage
    # past row N; those rows only affect padding columns that are sliced off.
    n_out = num_tiles * tile_n

    out = pl.pallas_call(
        _cosine_distance_kernel,
        out_shape=jax.ShapeDtypeStruct((1, n_out), jnp.float32),
        grid=(num_tiles,),
        in_specs=[
            pl.BlockSpec((tile_n, D), lambda i: (i, 0)),
            pl.BlockSpec((tile_n, D), lambda i: (i, 0)),
        ],
        out_specs=pl.BlockSpec((1, tile_n), lambda i: (0, i)),
        compiler_params=pltpu.CompilerParams(
            dimension_semantics=("parallel",),
            vmem_limit_bytes=vmem_limit,
        ),
    )(emb1, emb2)
    return out[0, :N]


def _reference(emb1, emb2):
    e1 = emb1.astype(jnp.float32)
    e2 = emb2.astype(jnp.float32)
    dot = jnp.sum(e1 * e2, axis=1)
    n1 = jnp.linalg.norm(e1, axis=1)
    n2 = jnp.linalg.norm(e2, axis=1)
    return 1.0 - dot / jnp.maximum(n1 * n2, _EPS)


if __name__ == "__main__":
    key = jax.random.PRNGKey(0)
    k1, k2, k3, k4, k5, k6 = jax.random.split(key, 6)

    # Embedding batch consistent with FullPairComparer (N pairs of D-dim embeddings).
    N, D = 8, 32
    emb1 = jax.random.normal(k1, (N, D), dtype=jnp.float32)
    emb2 = jax.random.normal(k2, (N, D), dtype=jnp.float32)
    dist = full_pair_comparer_cosine(emb1, emb2)
    jax.block_until_ready(dist)
    assert dist.shape == (N,)
    assert jnp.allclose(dist, _reference(emb1, emb2), atol=2e-5, rtol=2e-5)

    # Single-block path with N not a multiple of 8/128.
    N2, D2 = 100, 48
    e1 = jax.random.normal(k3, (N2, D2), dtype=jnp.float32)
    e2 = jax.random.normal(k4, (N2, D2), dtype=jnp.float32)
    d2 = full_pair_comparer_cosine(e1, e2)
    jax.block_until_ready(d2)
    assert d2.shape == (N2,)
    assert jnp.allclose(d2, _reference(e1, e2), atol=2e-5, rtol=2e-5)

    # Multi-tile ragged path: no input padding, padded lane-dense output sliced.
    N3, D3 = 300, 48
    f1 = jax.random.normal(k5, (N3, D3), dtype=jnp.float32)
    f2 = jax.random.normal(k6, (N3, D3), dtype=jnp.float32)
    d3 = full_pair_comparer_cosine(f1, f2, tile_n=128)
    jax.block_until_ready(d3)
    assert d3.shape == (N3,)
    assert jnp.allclose(d3, _reference(f1, f2), atol=2e-5, rtol=2e-5)

    print("KERNEL_OK")
</pallas_src>

<mosaic_0001>
module attributes {stable_mosaic.version = 11 : i64} {
  func.func @_cosine_distance_kernel(%arg0: i32, %arg1: memref<8x32xf32, #tpu.memory_space<vmem>>, %arg2: memref<8x32xf32, #tpu.memory_space<vmem>>, %arg3: memref<1x8xf32, #tpu.memory_space<vmem>>) attributes {dimension_semantics = [#tpu.dimension_semantics<parallel>], iteration_bounds = array<i64: 1>, scalar_prefetch = 0 : i64, scratch_operands = 0 : i64, tpu.core_type = #tpu.core_type<tc>, window_params = [{transform_indices = @transform_0, window_bounds = array<i64: 8, 32>}, {transform_indices = @transform_1, window_bounds = array<i64: 8, 32>}, {transform_indices = @transform_2, window_bounds = array<i64: 1, 8>}]} {
    %c0 = arith.constant 0 : index
    %c0_0 = arith.constant 0 : index
    %0 = vector.load %arg1[%c0, %c0_0] : memref<8x32xf32, #tpu.memory_space<vmem>>, vector<8x32xf32>
    %c0_1 = arith.constant 0 : index
    %c0_2 = arith.constant 0 : index
    %1 = vector.load %arg2[%c0_1, %c0_2] : memref<8x32xf32, #tpu.memory_space<vmem>>, vector<8x32xf32>
    %cst = arith.constant 1.000000e+00 : f32
    %2 = vector.broadcast %cst : f32 to vector<1x32xf32>
    %3 = arith.mulf %0, %1 : vector<8x32xf32>
    %cst_3 = arith.constant dense<0.000000e+00> : vector<1x8xf32>
    %4 = tpu.matmul %2, %3, %cst_3 {dimension_numbers = #tpu.dot_dimension_numbers<[1], [1], [0], [0], [0, 0, 1, 0], [], []>, precision = #tpu.contract_precision<fp32>} : vector<1x32xf32>, vector<8x32xf32>, vector<1x8xf32> -> vector<1x8xf32>
    %5 = arith.mulf %0, %0 : vector<8x32xf32>
    %cst_4 = arith.constant dense<0.000000e+00> : vector<1x8xf32>
    %6 = tpu.matmul %2, %5, %cst_4 {dimension_numbers = #tpu.dot_dimension_numbers<[1], [1], [0], [0], [0, 0, 1, 0], [], []>, precision = #tpu.contract_precision<fp32>} : vector<1x32xf32>, vector<8x32xf32>, vector<1x8xf32> -> vector<1x8xf32>
    %7 = arith.mulf %1, %1 : vector<8x32xf32>
    %cst_5 = arith.constant dense<0.000000e+00> : vector<1x8xf32>
    %8 = tpu.matmul %2, %7, %cst_5 {dimension_numbers = #tpu.dot_dimension_numbers<[1], [1], [0], [0], [0, 0, 1, 0], [], []>, precision = #tpu.contract_precision<fp32>} : vector<1x32xf32>, vector<8x32xf32>, vector<1x8xf32> -> vector<1x8xf32>
    %cst_6 = arith.constant 1.000000e-16 : f32
    %9 = vector.broadcast %cst_6 : f32 to vector<1x8xf32>
    %10 = arith.maximumf %6, %9 : vector<1x8xf32>
    %11 = math.rsqrt %10 : vector<1x8xf32>
    %cst_7 = arith.constant 1.000000e-16 : f32
    %12 = vector.broadcast %cst_7 : f32 to vector<1x8xf32>
    %13 = arith.maximumf %8, %12 : vector<1x8xf32>
    %14 = math.rsqrt %13 : vector<1x8xf32>
    %15 = arith.mulf %11, %14 : vector<1x8xf32>
    %16 = arith.mulf %4, %15 : vector<1x8xf32>
    %cst_8 = arith.constant 1.000000e+00 : f32
    %17 = vector.broadcast %cst_8 : f32 to vector<1x8xf32>
    %18 = arith.subf %17, %16 : vector<1x8xf32>
    %c0_9 = arith.constant 0 : index
    %c0_10 = arith.constant 0 : index
    %19 = vector.load %arg3[%c0_9, %c0_10] : memref<1x8xf32, #tpu.memory_space<vmem>>, vector<1x8xf32>
    tpu.vector_store %arg3[%c0_9, %c0_10], %18 {strides = array<i32>} : memref<1x8xf32, #tpu.memory_space<vmem>>, vector<1x8xf32>,
    return
  }
  func.func @transform_0(%arg0: i32) -> (i32, i32) {
    %c0_i32 = arith.constant 0 : i32
    %c0_i32_0 = arith.constant 0 : i32
    return %arg0, %c0_i32 : i32, i32
  }
  func.func @transform_1(%arg0: i32) -> (i32, i32) {
    %c0_i32 = arith.constant 0 : i32
    %c0_i32_0 = arith.constant 0 : i32
    return %arg0, %c0_i32 : i32, i32
  }
  func.func @transform_2(%arg0: i32) -> (i32, i32) {
    %c0_i32 = arith.constant 0 : i32
    %c0_i32_0 = arith.constant 0 : i32
    return %c0_i32, %arg0 : i32, i32
  }
}

</mosaic_0001>

<llo_original>
// kernel: full_pair_comparer_cosine.1
$region0: #{full_pair_comparer_cosine.1}
  #allocation0 [shape = 'u32[]', space=smem, size = 0x4, offset = 0x4, fixed_abs, tag = 'smem constant byte address 0x4 - core index']
  #allocation1 [shape = 'u32[144,128]{1,0:T(1,128)}', space=vmem, size = 0x12000, scoped, tag = 'internal scratch']
  %s0 = inlined_call_operand.hbm [shape: f32[8,32], index: 0, kind: input, shape index: {}]
  %s1 = inlined_call_operand.hbm [shape: f32[8,32], index: 1, kind: input, shape index: {}]
  %s2 = inlined_call_operand.hbm [shape: f32[1,8], index: 2, kind: output, shape index: {}]
  %s3 = sld [smem:[#allocation0]]
  $region26: #{full_pair_comparer_cosine.1} parent=0
    _
  %s5 = ssub.s32 1, %s3
  %s6 = scalar_select 0, %s5, %s3
  $region1: #{full_pair_comparer_cosine.1} parent=0
    #allocation2 [shape = 'u8[4096]{0}', space=vmem, size = 0x1000, scoped, tag = 'input window, operand 0, single buffered']
    #allocation3 [shape = 's32[1]{0}', space=sflag, size = 0x4, scoped, tag = 'scoped memory for full_pair_comparer_cosine.1']
    #allocation4 [shape = 's32[1]{0}', space=sflag, size = 0x4, scoped, tag = 'scoped memory for full_pair_comparer_cosine.1']
    #allocation5 [shape = 'u8[4096]{0}', space=vmem, size = 0x1000, scoped, tag = 'input window, operand 1, single buffered']
    #allocation6 [shape = 's32[1]{0}', space=sflag, size = 0x4, scoped, tag = 'scoped memory for full_pair_comparer_cosine.1']
    #allocation7 [shape = 'u8[512]{0}', space=vmem, size = 0x400, scoped, tag = 'output window, operand 0, single buffered']
    %7 = vsyncpa [#allocation3], 0
    %8 = vsyncpa [#allocation6], 0
    %9 = vsyncpa [#allocation4], 0
    // Predicated region
    $region2: #{full_pair_comparer_cosine.1} parent=1 // pred_check
      _
    $region3: #{full_pair_comparer_cosine.1} parent=1 // pred_check_branch
      %11 = sbr.rel (0) target = $region5
    $region4: #{full_pair_comparer_cosine.1} parent=1 // pred_region
      %s13 = ssub.s32 128, 128
      %14 = vsyncadd [#allocation3], %s13
      %s16 = sshll.u32 [#allocation2], 4
      %s17 = int_to_ptr.vmem [resolvable:$true] %s16
      %19 = dma.hbm_to_vmem [thread:$0]  %s0, 128, %s17, [#allocation3]
    $region5: #{full_pair_comparer_cosine.1} parent=1 // pred_fallthru
      _
    // Predicated region
    $region6: #{full_pair_comparer_cosine.1} parent=1 // pred_check
      _
    $region7: #{full_pair_comparer_cosine.1} parent=1 // pred_check_branch
      %21 = sbr.rel (0) target = $region9
    $region8: #{full_pair_comparer_cosine.1} parent=1 // pred_region
      %s23 = ssub.s32 128, 128
      %24 = vsyncadd [#allocation6], %s23
      %s26 = sshll.u32 [#allocation5], 4
      %s27 = int_to_ptr.vmem [resolvable:$true] %s26
      %29 = dma.hbm_to_vmem [thread:$0]  %s1, 128, %s27, [#allocation6]
    $region9: #{full_pair_comparer_cosine.1} parent=1 // pred_fallthru
      _
    // Predicated region
    $region10: #{full_pair_comparer_cosine.1} parent=1 // pred_check
      _
    $region11: #{full_pair_comparer_cosine.1} parent=1 // pred_check_branch
      %31 = sbr.rel (0) target = $region13
    $region12: #{full_pair_comparer_cosine.1} parent=1 // pred_region
      %32 = dma.done [#allocation3], 128
    $region13: #{full_pair_comparer_cosine.1} parent=1 // pred_fallthru
      _
    // Predicated region
    $region14: #{full_pair_comparer_cosine.1} parent=1 // pred_check
      _
    $region15: #{full_pair_comparer_cosine.1} parent=1 // pred_check_branch
      %34 = sbr.rel (0) target = $region17
    $region16: #{full_pair_comparer_cosine.1} parent=1 // pred_region
      %35 = dma.done [#allocation6], 128
    $region17: #{full_pair_comparer_cosine.1} parent=1 // pred_fallthru
      _
    %v36 = vld [vmem:[#allocation2] sm:$0xff]
    %v37 = vld [vmem:[#allocation5] sm:$0xff]
    %v38 = vmul.f32 %v36, %v37
    %vm39 = vcmask 261120
    %v41 = vsel %vm39, 1.0, 0
    %v44 = vsel %vm39, %v38, 0
    %46 = vmatprep.subr.mxu0 0.0
    %47 = vmatpush1.xpose.msra.mxu0 0.0
    %48 = vmatprep.subr.mxu0 0.0
    %49 = vmatpush1.xpose.msra.mxu0 0.0
    %50 = vmatprep.subr.mxu0 0.0
    %51 = vmatpush1.xpose.msra.mxu0 0.0
    %52 = vmatprep.subr.mxu0 0.0
    %53 = vmatpush1.xpose.msra.mxu0 0.0
    %54 = vmatprep.subr.mxu0 0.0
    %55 = vmatpush1.xpose.msra.mxu0 0.0
    %56 = vmatprep.subr.mxu0 0.0
    %57 = vmatpush1.xpose.msra.mxu0 0.0
    %58 = vmatprep.subr.mxu0 0.0
    %59 = vmatpush1.xpose.msra.mxu0 0.0
    %60 = vmatprep.subr.mxu0 0.0
    %61 = vmatpush1.xpose.msra.mxu0 0.0
    %62 = vmatprep.subr.mxu0 0.0
    %63 = vmatpush1.xpose.msra.mxu0 0.0
    %64 = vmatprep.subr.mxu0 0.0
    %65 = vmatpush1.xpose.msra.mxu0 0.0
    %66 = vmatprep.subr.mxu0 0.0
    %67 = vmatpush1.xpose.msra.mxu0 0.0
    %68 = vmatprep.subr.mxu0 0.0
    %69 = vmatpush1.xpose.msra.mxu0 0.0
    %70 = vmatprep.subr.mxu0 0.0
    %71 = vmatpush1.xpose.msra.mxu0 0.0
    %72 = vmatprep.subr.mxu0 0.0
    %73 = vmatpush1.xpose.msra.mxu0 0.0
    %74 = vmatprep.subr.mxu0 0.0
    %75 = vmatpush1.xpose.msra.mxu0 0.0
    %76 = vmatprep.subr.mxu0 0.0
    %v77 = vand.u32 %v44, 4294901760
    %78 = vmatpush1.xpose.msra.mxu0 %v77
    %79 = vmatprep.subr.mxu0 0.0
    %80 = vmatpush2.xpose.msra.mxu0 0.0
    %81 = vmatprep.subr.mxu0 0.0
    %82 = vmatpush2.xpose.msra.mxu0 0.0
    %83 = vmatprep.subr.mxu0 0.0
    %84 = vmatpush2.xpose.msra.mxu0 0.0
    %85 = vmatprep.subr.mxu0 0.0
    %86 = vmatpush2.xpose.msra.mxu0 0.0
    %87 = vmatprep.subr.mxu0 0.0
    %88 = vmatpush2.xpose.msra.mxu0 0.0
    %89 = vmatprep.subr.mxu0 0.0
    %90 = vmatpush2.xpose.msra.mxu0 0.0
    %91 = vmatprep.subr.mxu0 0.0
    %92 = vmatpush2.xpose.msra.mxu0 0.0
    %93 = vmatprep.subr.mxu0 0.0
    %94 = vmatpush2.xpose.msra.mxu0 0.0
    %95 = vmatprep.subr.mxu0 0.0
    %96 = vmatpush2.xpose.msra.mxu0 0.0
    %97 = vmatprep.subr.mxu0 0.0
    %98 = vmatpush2.xpose.msra.mxu0 0.0
    %99 = vmatprep.subr.mxu0 0.0
    %100 = vmatpush2.xpose.msra.mxu0 0.0
    %101 = vmatprep.subr.mxu0 0.0
    %102 = vmatpush2.xpose.msra.mxu0 0.0
    %103 = vmatprep.subr.mxu0 0.0
    %104 = vmatpush2.xpose.msra.mxu0 0.0
    %105 = vmatprep.subr.mxu0 0.0
    %106 = vmatpush2.xpose.msra.mxu0 0.0
    %107 = vmatprep.subr.mxu0 0.0
    %108 = vmatpush2.xpose.msra.mxu0 0.0
    %109 = vmatprep.subr.mxu0 0.0
    %110 = vmatpush2.xpose.msra.mxu0 0.0
    %111 = vmatprep.mubr.f32.mxu0 0.0
    %v112 = vand.u32 %v41, 4294901760
    %v113 = vsub.f32 %v41, %v112
    %v114 = vand.u32 %v113, 4294901760
    %v115 = vsub.f32 %v113, %v114
    %v116 = vand.u32 %v115, 4294901760
    %117 = vmatmul.mubr.f32.gmra.mxu0 %v116
    %v118 = vpop.f32.mrf.mxu0
    %v119 = vadd.f32 0.0, %v118
    %v120 = vpop.f32.mrf.mxu0
    %121 = vdwg.mxu0
    %122 = vmatprep.subr.mxu0 0.0
    %123 = vmatpush1.xpose.msra.mxu0 0.0
    %124 = vmatprep.subr.mxu0 0.0
    %125 = vmatpush1.xpose.msra.mxu0 0.0
    %126 = vmatprep.subr.mxu0 0.0
    %127 = vmatpush1.xpose.msra.mxu0 0.0
    %128 = vmatprep.subr.mxu0 0.0
    %129 = vmatpush1.xpose.msra.mxu0 0.0
    %130 = vmatprep.subr.mxu0 0.0
    %131 = vmatpush1.xpose.msra.mxu0 0.0
    %132 = vmatprep.subr.mxu0 0.0
    %133 = vmatpush1.xpose.msra.mxu0 0.0
    %134 = vmatprep.subr.mxu0 0.0
    %135 = vmatpush1.xpose.msra.mxu0 0.0
    %136 = vmatprep.subr.mxu0 0.0
    %137 = vmatpush1.xpose.msra.mxu0 0.0
    %138 = vmatprep.subr.mxu0 0.0
    %139 = vmatpush1.xpose.msra.mxu0 0.0
    %140 = vmatprep.subr.mxu0 0.0
    %141 = vmatpush1.xpose.msra.mxu0 0.0
    %142 = vmatprep.subr.mxu0 0.0
    %143 = vmatpush1.xpose.msra.mxu0 0.0
    %144 = vmatprep.subr.mxu0 0.0
    %145 = vmatpush1.xpose.msra.mxu0 0.0
    %146 = vmatprep.subr.mxu0 0.0
    %147 = vmatpush1.xpose.msra.mxu0 0.0
    %148 = vmatprep.subr.mxu0 0.0
    %149 = vmatpush1.xpose.msra.mxu0 0.0
    %150 = vmatprep.subr.mxu0 0.0
    %151 = vmatpush1.xpose.msra.mxu0 0.0
    %152 = vmatprep.subr.mxu0 0.0
    %v153 = vand.u32 %v44, 4294901760
    %v154 = vsub.f32 %v44, %v153
    %v155 = vand.u32 %v154, 4294901760
    %v156 = vsub.f32 %v154, %v155
    %v157 = vand.u32 %v156, 4294901760
    %158 = vmatpush1.xpose.msra.mxu0 %v157
    %159 = vmatprep.subr.mxu0 0.0
    %160 = vmatpush2.xpose.msra.mxu0 0.0
    %161 = vmatprep.subr.mxu0 0.0
    %162 = vmatpush2.xpose.msra.mxu0 0.0
    %163 = vmatprep.subr.mxu0 0.0
    %164 = vmatpush2.xpose.msra.mxu0 0.0
    %165 = vmatprep.subr.mxu0 0.0
    %166 = vmatpush2.xpose.msra.mxu0 0.0
    %167 = vmatprep.subr.mxu0 0.0
    %168 = vmatpush2.xpose.msra.mxu0 0.0
    %169 = vmatprep.subr.mxu0 0.0
    %170 = vmatpush2.xpose.msra.mxu0 0.0
    %171 = vmatprep.subr.mxu0 0.0
    %172 = vmatpush2.xpose.msra.mxu0 0.0
    %173 = vmatprep.subr.mxu0 0.0
    %174 = vmatpush2.xpose.msra.mxu0 0.0
    %175 = vmatprep.subr.mxu0 0.0
    %176 = vmatpush2.xpose.msra.mxu0 0.0
    %177 = vmatprep.subr.mxu0 0.0
    %178 = vmatpush2.xpose.msra.mxu0 0.0
    %179 = vmatprep.subr.mxu0 0.0
    %180 = vmatpush2.xpose.msra.mxu0 0.0
    %181 = vmatprep.subr.mxu0 0.0
    %182 = vmatpush2.xpose.msra.mxu0 0.0
    %183 = vmatprep.subr.mxu0 0.0
    %184 = vmatpush2.xpose.msra.mxu0 0.0
    %185 = vmatprep.subr.mxu0 0.0
    %186 = vmatpush2.xpose.msra.mxu0 0.0
    %187 = vmatprep.subr.mxu0 0.0
    %188 = vmatpush2.xpose.msra.mxu0 0.0
    %189 = vmatprep.subr.mxu0 0.0
    %190 = vmatpush2.xpose.msra.mxu0 0.0
    %191 = vmatprep.mubr.f32.mxu0 0.0
    %v192 = vand.u32 %v41, 4294901760
    %193 = vmatmul.mubr.f32.gmra.mxu0 %v192
    %v194 = vpop.f32.mrf.mxu0
    %v195 = vadd.f32 %v119, %v194
    %v196 = vpop.f32.mrf.mxu0
    %197 = vdwg.mxu0
    %198 = vmatprep.subr.mxu0 0.0
    %199 = vmatpush1.xpose.msra.mxu0 0.0
    %200 = vmatprep.subr.mxu0 0.0
    %201 = vmatpush1.xpose.msra.mxu0 0.0
    %202 = vmatprep.subr.mxu0 0.0
    %203 = vmatpush1.xpose.msra.mxu0 0.0
    %204 = vmatprep.subr.mxu0 0.0
    %205 = vmatpush1.xpose.msra.mxu0 0.0
    %206 = vmatprep.subr.mxu0 0.0
    %207 = vmatpush1.xpose.msra.mxu0 0.0
    %208 = vmatprep.subr.mxu0 0.0
    %209 = vmatpush1.xpose.msra.mxu0 0.0
    %210 = vmatprep.subr.mxu0 0.0
    %211 = vmatpush1.xpose.msra.mxu0 0.0
    %212 = vmatprep.subr.mxu0 0.0
    %213 = vmatpush1.xpose.msra.mxu0 0.0
    %214 = vmatprep.subr.mxu0 0.0
    %215 = vmatpush1.xpose.msra.mxu0 0.0
    %216 = vmatprep.subr.mxu0 0.0
    %217 = vmatpush1.xpose.msra.mxu0 0.0
    %218 = vmatprep.subr.mxu0 0.0
    %219 = vmatpush1.xpose.msra.mxu0 0.0
    %220 = vmatprep.subr.mxu0 0.0
    %221 = vmatpush1.xpose.msra.mxu0 0.0
    %222 = vmatprep.subr.mxu0 0.0
    %223 = vmatpush1.xpose.msra.mxu0 0.0
    %224 = vmatprep.subr.mxu0 0.0
    %225 = vmatpush1.xpose.msra.mxu0 0.0
    %226 = vmatprep.subr.mxu0 0.0
    %227 = vmatpush1.xpose.msra.mxu0 0.0
    %228 = vmatprep.subr.mxu0 0.0
    %v229 = vand.u32 %v44, 4294901760
    %v230 = vsub.f32 %v44, %v229
    %231 = vmatpush1.xpose.msra.mxu0 %v230
    %232 = vmatprep.subr.mxu0 0.0
    %233 = vmatpush2.xpose.msra.mxu0 0.0
    %234 = vmatprep.subr.mxu0 0.0
    %235 = vmatpush2.xpose.msra.mxu0 0.0
    %236 = vmatprep.subr.mxu0 0.0
    %237 = vmatpush2.xpose.msra.mxu0 0.0
    %238 = vmatprep.subr.mxu0 0.0
    %239 = vmatpush2.xpose.msra.mxu0 0.0
    %240 = vmatprep.subr.mxu0 0.0
    %241 = vmatpush2.xpose.msra.mxu0 0.0
    %242 = vmatprep.subr.mxu0 0.0
    %243 = vmatpush2.xpose.msra.mxu0 0.0
    %244 = vmatprep.subr.mxu0 0.0
    %245 = vmatpush2.xpose.msra.mxu0 0.0
    %246 = vmatprep.subr.mxu0 0.0
    %247 = vmatpush2.xpose.msra.mxu0 0.0
    %248 = vmatprep.subr.mxu0 0.0
    %249 = vmatpush2.xpose.msra.mxu0 0.0
    %250 = vmatprep.subr.mxu0 0.0
    %251 = vmatpush2.xpose.msra.mxu0 0.0
    %252 = vmatprep.subr.mxu0 0.0
    %253 = vmatpush2.xpose.msra.mxu0 0.0
    %254 = vmatprep.subr.mxu0 0.0
    %255 = vmatpush2.xpose.msra.mxu0 0.0
    %256 = vmatprep.subr.mxu0 0.0
    %257 = vmatpush2.xpose.msra.mxu0 0.0
    %258 = vmatprep.subr.mxu0 0.0
    %259 = vmatpush2.xpose.msra.mxu0 0.0
    %260 = vmatprep.subr.mxu0 0.0
    %261 = vmatpush2.xpose.msra.mxu0 0.0
    %262 = vmatprep.subr.mxu0 0.0
    %263 = vmatpush2.xpose.msra.mxu0 0.0
    %264 = vmatprep.mubr.f32.mxu0 0.0
    %v265 = vand.u32 %v41, 4294901760
    %v266 = vsub.f32 %v41, %v265
    %267 = vmatmul.mubr.f32.gmra.mxu0 %v266
    %v268 = vpop.f32.mrf.mxu0
    %v269 = vadd.f32 %v195, %v268
    %v270 = vpop.f32.mrf.mxu0
    %271 = vdwg.mxu0
    %272 = vmatprep.subr.mxu0 0.0
    %273 = vmatpush1.xpose.msra.mxu0 0.0
    %274 = vmatprep.subr.mxu0 0.0
    %275 = vmatpush1.xpose.msra.mxu0 0.0
    %276 = vmatprep.subr.mxu0 0.0
    %277 = vmatpush1.xpose.msra.mxu0 0.0
    %278 = vmatprep.subr.mxu0 0.0
    %279 = vmatpush1.xpose.msra.mxu0 0.0
    %280 = vmatprep.subr.mxu0 0.0
    %281 = vmatpush1.xpose.msra.mxu0 0.0
    %282 = vmatprep.subr.mxu0 0.0
    %283 = vmatpush1.xpose.msra.mxu0 0.0
    %284 = vmatprep.subr.mxu0 0.0
    %285 = vmatpush1.xpose.msra.mxu0 0.0
    %286 = vmatprep.subr.mxu0 0.0
    %287 = vmatpush1.xpose.msra.mxu0 0.0
    %288 = vmatprep.subr.mxu0 0.0
    %289 = vmatpush1.xpose.msra.mxu0 0.0
    %290 = vmatprep.subr.mxu0 0.0
    %291 = vmatpush1.xpose.msra.mxu0 0.0
    %292 = vmatprep.subr.mxu0 0.0
    %293 = vmatpush1.xpose.msra.mxu0 0.0
    %294 = vmatprep.subr.mxu0 0.0
    %295 = vmatpush1.xpose.msra.mxu0 0.0
    %296 = vmatprep.subr.mxu0 0.0
    %297 = vmatpush1.xpose.msra.mxu0 0.0
    %298 = vmatprep.subr.mxu0 0.0
    %299 = vmatpush1.xpose.msra.mxu0 0.0
    %300 = vmatprep.subr.mxu0 0.0
    %301 = vmatpush1.xpose.msra.mxu0 0.0
    %302 = vmatprep.subr.mxu0 0.0
    %v303 = vand.u32 %v44, 4294901760
    %304 = vmatpush1.xpose.msra.mxu0 %v303
    %305 = vmatprep.subr.mxu0 0.0
    %306 = vmatpush2.xpose.msra.mxu0 0.0
    %307 = vmatprep.subr.mxu0 0.0
    %308 = vmatpush2.xpose.msra.mxu0 0.0
    %309 = vmatprep.subr.mxu0 0.0
    %310 = vmatpush2.xpose.msra.mxu0 0.0
    %311 = vmatprep.subr.mxu0 0.0
    %312 = vmatpush2.xpose.msra.mxu0 0.0
    %313 = vmatprep.subr.mxu0 0.0
    %314 = vmatpush2.xpose.msra.mxu0 0.0
    %315 = vmatprep.subr.mxu0 0.0
    %316 = vmatpush2.xpose.msra.mxu0 0.0
    %317 = vmatprep.subr.mxu0 0.0
    %318 = vmatpush2.xpose.msra.mxu0 0.0
    %319 = vmatprep.subr.mxu0 0.0
    %320 = vmatpush2.xpose.msra.mxu0 0.0
    %321 = vmatprep.subr.mxu0 0.0
    %322 = vmatpush2.xpose.msra.mxu0 0.0
    %323 = vmatprep.subr.mxu0 0.0
    %324 = vmatpush2.xpose.msra.mxu0 0.0
    %325 = vmatprep.subr.mxu0 0.0
    %326 = vmatpush2.xpose.msra.mxu0 0.0
    %327 = vmatprep.subr.mxu0 0.0
    %328 = vmatpush2.xpose.msra.mxu0 0.0
    %329 = vmatprep.subr.mxu0 0.0
    %330 = vmatpush2.xpose.msra.mxu0 0.0
    %331 = vmatprep.subr.mxu0 0.0
    %332 = vmatpush2.xpose.msra.mxu0 0.0
    %333 = vmatprep.subr.mxu0 0.0
    %334 = vmatpush2.xpose.msra.mxu0 0.0
    %335 = vmatprep.subr.mxu0 0.0
    %336 = vmatpush2.xpose.msra.mxu0 0.0
    %337 = vmatprep.mubr.f32.mxu0 0.0
    %v338 = vand.u32 %v41, 4294901760
    %v339 = vsub.f32 %v41, %v338
    %v340 = vand.u32 %v339, 4294901760
    %341 = vmatmul.mubr.f32.gmra.mxu0 %v340
    %v342 = vpop.f32.mrf.mxu0
    %v343 = vadd.f32 %v269, %v342
    %v344 = vpop.f32.mrf.mxu0
    %345 = vdwg.mxu0
    %346 = vmatprep.subr.mxu0 0.0
    %347 = vmatpush1.xpose.msra.mxu0 0.0
    %348 = vmatprep.subr.mxu0 0.0
    %349 = vmatpush1.xpose.msra.mxu0 0.0
    %350 = vmatprep.subr.mxu0 0.0
    %351 = vmatpush1.xpose.msra.mxu0 0.0
    %352 = vmatprep.subr.mxu0 0.0
    %353 = vmatpush1.xpose.msra.mxu0 0.0
    %354 = vmatprep.subr.mxu0 0.0
    %355 = vmatpush1.xpose.msra.mxu0 0.0
    %356 = vmatprep.subr.mxu0 0.0
    %357 = vmatpush1.xpose.msra.mxu0 0.0
    %358 = vmatprep.subr.mxu0 0.0
    %359 = vmatpush1.xpose.msra.mxu0 0.0
    %360 = vmatprep.subr.mxu0 0.0
    %361 = vmatpush1.xpose.msra.mxu0 0.0
    %362 = vmatprep.subr.mxu0 0.0
    %363 = vmatpush1.xpose.msra.mxu0 0.0
    %364 = vmatprep.subr.mxu0 0.0
    %365 = vmatpush1.xpose.msra.mxu0 0.0
    %366 = vmatprep.subr.mxu0 0.0
    %367 = vmatpush1.xpose.msra.mxu0 0.0
    %368 = vmatprep.subr.mxu0 0.0
    %369 = vmatpush1.xpose.msra.mxu0 0.0
    %370 = vmatprep.subr.mxu0 0.0
    %371 = vmatpush1.xpose.msra.mxu0 0.0
    %372 = vmatprep.subr.mxu0 0.0
    %373 = vmatpush1.xpose.msra.mxu0 0.0
    %374 = vmatprep.subr.mxu0 0.0
    %375 = vmatpush1.xpose.msra.mxu0 0.0
    %376 = vmatprep.subr.mxu0 0.0
    %v377 = vand.u32 %v44, 4294901760
    %v378 = vsub.f32 %v44, %v377
    %v379 = vand.u32 %v378, 4294901760
    %380 = vmatpush1.xpose.msra.mxu0 %v379
    %381 = vmatprep.subr.mxu0 0.0
    %382 = vmatpush2.xpose.msra.mxu0 0.0
    %383 = vmatprep.subr.mxu0 0.0
    %384 = vmatpush2.xpose.msra.mxu0 0.0
    %385 = vmatprep.subr.mxu0 0.0
    %386 = vmatpush2.xpose.msra.mxu0 0.0
    %387 = vmatprep.subr.mxu0 0.0
    %388 = vmatpush2.xpose.msra.mxu0 0.0
    %389 = vmatprep.subr.mxu0 0.0
    %390 = vmatpush2.xpose.msra.mxu0 0.0
    %391 = vmatprep.subr.mxu0 0.0
    %392 = vmatpush2.xpose.msra.mxu0 0.0
    %393 = vmatprep.subr.mxu0 0.0
    %394 = vmatpush2.xpose.msra.mxu0 0.0
    %395 = vmatprep.subr.mxu0 0.0
    %396 = vmatpush2.xpose.msra.mxu0 0.0
    %397 = vmatprep.subr.mxu0 0.0
    %398 = vmatpush2.xpose.msra.mxu0 0.0
    %399 = vmatprep.subr.mxu0 0.0
    %400 = vmatpush2.xpose.msra.mxu0 0.0
    %401 = vmatprep.subr.mxu0 0.0
    %402 = vmatpush2.xpose.msra.mxu0 0.0
    %403 = vmatprep.subr.mxu0 0.0
    %404 = vmatpush2.xpose.msra.mxu0 0.0
    %405 = vmatprep.subr.mxu0 0.0
    %406 = vmatpush2.xpose.msra.mxu0 0.0
    %407 = vmatprep.subr.mxu0 0.0
    %408 = vmatpush2.xpose.msra.mxu0 0.0
    %409 = vmatprep.subr.mxu0 0.0
    %410 = vmatpush2.xpose.msra.mxu0 0.0
    %411 = vmatprep.subr.mxu0 0.0
    %412 = vmatpush2.xpose.msra.mxu0 0.0
    %413 = vmatprep.mubr.f32.mxu0 0.0
    %v414 = vand.u32 %v41, 4294901760
    %415 = vmatmul.mubr.f32.gmra.mxu0 %v414
    %v416 = vpop.f32.mrf.mxu0
    %v417 = vadd.f32 %v343, %v416
    %v418 = vpop.f32.mrf.mxu0
    %419 = vdwg.mxu0
    %420 = vmatprep.subr.mxu0 0.0
    %421 = vmatpush1.xpose.msra.mxu0 0.0
    %422 = vmatprep.subr.mxu0 0.0
    %423 = vmatpush1.xpose.msra.mxu0 0.0
    %424 = vmatprep.subr.mxu0 0.0
    %425 = vmatpush1.xpose.msra.mxu0 0.0
    %426 = vmatprep.subr.mxu0 0.0
    %427 = vmatpush1.xpose.msra.mxu0 0.0
    %428 = vmatprep.subr.mxu0 0.0
    %429 = vmatpush1.xpose.msra.mxu0 0.0
    %430 = vmatprep.subr.mxu0 0.0
    %431 = vmatpush1.xpose.msra.mxu0 0.0
    %432 = vmatprep.subr.mxu0 0.0
    %433 = vmatpush1.xpose.msra.mxu0 0.0
    %434 = vmatprep.subr.mxu0 0.0
    %435 = vmatpush1.xpose.msra.mxu0 0.0
    %436 = vmatprep.subr.mxu0 0.0
    %437 = vmatpush1.xpose.msra.mxu0 0.0
    %438 = vmatprep.subr.mxu0 0.0
    %439 = vmatpush1.xpose.msra.mxu0 0.0
    %440 = vmatprep.subr.mxu0 0.0
    %441 = vmatpush1.xpose.msra.mxu0 0.0
    %442 = vmatprep.subr.mxu0 0.0
    %443 = vmatpush1.xpose.msra.mxu0 0.0
    %444 = vmatprep.subr.mxu0 0.0
    %445 = vmatpush1.xpose.msra.mxu0 0.0
    %446 = vmatprep.subr.mxu0 0.0
    %447 = vmatpush1.xpose.msra.mxu0 0.0
    %448 = vmatprep.subr.mxu0 0.0
    %449 = vmatpush1.xpose.msra.mxu0 0.0
    %450 = vmatprep.subr.mxu0 0.0
    %v451 = vand.u32 %v44, 4294901760
    %452 = vmatpush1.xpose.msra.mxu0 %v451
    %453 = vmatprep.subr.mxu0 0.0
    %454 = vmatpush2.xpose.msra.mxu0 0.0
    %455 = vmatprep.subr.mxu0 0.0
    %456 = vmatpush2.xpose.msra.mxu0 0.0
    %457 = vmatprep.subr.mxu0 0.0
    %458 = vmatpush2.xpose.msra.mxu0 0.0
    %459 = vmatprep.subr.mxu0 0.0
    %460 = vmatpush2.xpose.msra.mxu0 0.0
    %461 = vmatprep.subr.mxu0 0.0
    %462 = vmatpush2.xpose.msra.mxu0 0.0
    %463 = vmatprep.subr.mxu0 0.0
    %464 = vmatpush2.xpose.msra.mxu0 0.0
    %465 = vmatprep.subr.mxu0 0.0
    %466 = vmatpush2.xpose.msra.mxu0 0.0
    %467 = vmatprep.subr.mxu0 0.0
    %468 = vmatpush2.xpose.msra.mxu0 0.0
    %469 = vmatprep.subr.mxu0 0.0
    %470 = vmatpush2.xpose.msra.mxu0 0.0
    %471 = vmatprep.subr.mxu0 0.0
    %472 = vmatpush2.xpose.msra.mxu0 0.0
    %473 = vmatprep.subr.mxu0 0.0
    %474 = vmatpush2.xpose.msra.mxu0 0.0
    %475 = vmatprep.subr.mxu0 0.0
    %476 = vmatpush2.xpose.msra.mxu0 0.0
    %477 = vmatprep.subr.mxu0 0.0
    %478 = vmatpush2.xpose.msra.mxu0 0.0
    %479 = vmatprep.subr.mxu0 0.0
    %480 = vmatpush2.xpose.msra.mxu0 0.0
    %481 = vmatprep.subr.mxu0 0.0
    %482 = vmatpush2.xpose.msra.mxu0 0.0
    %483 = vmatprep.subr.mxu0 0.0
    %484 = vmatpush2.xpose.msra.mxu0 0.0
    %485 = vmatprep.mubr.f32.mxu0 0.0
    %v486 = vand.u32 %v41, 4294901760
    %487 = vmatmul.mubr.f32.gmra.mxu0 %v486
    %v488 = vpop.f32.mrf.mxu0
    %v489 = vadd.f32 %v417, %v488
    %v490 = vpop.f32.mrf.mxu0
    %491 = vdwg.mxu0
    %v492 = vmul.f32 %v36, %v36
    %v494 = vsel %vm39, %v492, 0
    %496 = vmatprep.subr.mxu0 0.0
    %497 = vmatpush1.xpose.msra.mxu0 0.0
    %498 = vmatprep.subr.mxu0 0.0
    %499 = vmatpush1.xpose.msra.mxu0 0.0
    %500 = vmatprep.subr.mxu0 0.0
    %501 = vmatpush1.xpose.msra.mxu0 0.0
    %502 = vmatprep.subr.mxu0 0.0
    %503 = vmatpush1.xpose.msra.mxu0 0.0
    %504 = vmatprep.subr.mxu0 0.0
    %505 = vmatpush1.xpose.msra.mxu0 0.0
    %506 = vmatprep.subr.mxu0 0.0
    %507 = vmatpush1.xpose.msra.mxu0 0.0
    %508 = vmatprep.subr.mxu0 0.0
    %509 = vmatpush1.xpose.msra.mxu0 0.0
    %510 = vmatprep.subr.mxu0 0.0
    %511 = vmatpush1.xpose.msra.mxu0 0.0
    %512 = vmatprep.subr.mxu0 0.0
    %513 = vmatpush1.xpose.msra.mxu0 0.0
    %514 = vmatprep.subr.mxu0 0.0
    %515 = vmatpush1.xpose.msra.mxu0 0.0
    %516 = vmatprep.subr.mxu0 0.0
    %517 = vmatpush1.xpose.msra.mxu0 0.0
    %518 = vmatprep.subr.mxu0 0.0
    %519 = vmatpush1.xpose.msra.mxu0 0.0
    %520 = vmatprep.subr.mxu0 0.0
    %521 = vmatpush1.xpose.msra.mxu0 0.0
    %522 = vmatprep.subr.mxu0 0.0
    %523 = vmatpush1.xpose.msra.mxu0 0.0
    %524 = vmatprep.subr.mxu0 0.0
    %525 = vmatpush1.xpose.msra.mxu0 0.0
    %526 = vmatprep.subr.mxu0 0.0
    %v527 = vand.u32 %v494, 4294901760
    %528 = vmatpush1.xpose.msra.mxu0 %v527
    %529 = vmatprep.subr.mxu0 0.0
    %530 = vmatpush2.xpose.msra.mxu0 0.0
    %531 = vmatprep.subr.mxu0 0.0
    %532 = vmatpush2.xpose.msra.mxu0 0.0
    %533 = vmatprep.subr.mxu0 0.0
    %534 = vmatpush2.xpose.msra.mxu0 0.0
    %535 = vmatprep.subr.mxu0 0.0
    %536 = vmatpush2.xpose.msra.mxu0 0.0
    %537 = vmatprep.subr.mxu0 0.0
    %538 = vmatpush2.xpose.msra.mxu0 0.0
    %539 = vmatprep.subr.mxu0 0.0
    %540 = vmatpush2.xpose.msra.mxu0 0.0
    %541 = vmatprep.subr.mxu0 0.0
    %542 = vmatpush2.xpose.msra.mxu0 0.0
    %543 = vmatprep.subr.mxu0 0.0
    %544 = vmatpush2.xpose.msra.mxu0 0.0
    %545 = vmatprep.subr.mxu0 0.0
    %546 = vmatpush2.xpose.msra.mxu0 0.0
    %547 = vmatprep.subr.mxu0 0.0
    %548 = vmatpush2.xpose.msra.mxu0 0.0
    %549 = vmatprep.subr.mxu0 0.0
    %550 = vmatpush2.xpose.msra.mxu0 0.0
    %551 = vmatprep.subr.mxu0 0.0
    %552 = vmatpush2.xpose.msra.mxu0 0.0
    %553 = vmatprep.subr.mxu0 0.0
    %554 = vmatpush2.xpose.msra.mxu0 0.0
    %555 = vmatprep.subr.mxu0 0.0
    %556 = vmatpush2.xpose.msra.mxu0 0.0
    %557 = vmatprep.subr.mxu0 0.0
    %558 = vmatpush2.xpose.msra.mxu0 0.0
    %559 = vmatprep.subr.mxu0 0.0
    %560 = vmatpush2.xpose.msra.mxu0 0.0
    %561 = vmatprep.mubr.f32.mxu0 0.0
    %v562 = vand.u32 %v41, 4294901760
    %v563 = vsub.f32 %v41, %v562
    %v564 = vand.u32 %v563, 4294901760
    %v565 = vsub.f32 %v563, %v564
    %v566 = vand.u32 %v565, 4294901760
    %567 = vmatmul.mubr.f32.gmra.mxu0 %v566
    %v568 = vpop.f32.mrf.mxu0
    %v569 = vadd.f32 0.0, %v568
    %v570 = vpop.f32.mrf.mxu0
    %571 = vdwg.mxu0
    %572 = vmatprep.subr.mxu0 0.0
    %573 = vmatpush1.xpose.msra.mxu0 0.0
    %574 = vmatprep.subr.mxu0 0.0
    %575 = vmatpush1.xpose.msra.mxu0 0.0
    %576 = vmatprep.subr.mxu0 0.0
    %577 = vmatpush1.xpose.msra.mxu0 0.0
    %578 = vmatprep.subr.mxu0 0.0
    %579 = vmatpush1.xpose.msra.mxu0 0.0
    %580 = vmatprep.subr.mxu0 0.0
    %581 = vmatpush1.xpose.msra.mxu0 0.0
    %582 = vmatprep.subr.mxu0 0.0
    %583 = vmatpush1.xpose.msra.mxu0 0.0
    %584 = vmatprep.subr.mxu0 0.0
    %585 = vmatpush1.xpose.msra.mxu0 0.0
    %586 = vmatprep.subr.mxu0 0.0
    %587 = vmatpush1.xpose.msra.mxu0 0.0
    %588 = vmatprep.subr.mxu0 0.0
    %589 = vmatpush1.xpose.msra.mxu0 0.0
    %590 = vmatprep.subr.mxu0 0.0
    %591 = vmatpush1.xpose.msra.mxu0 0.0
    %592 = vmatprep.subr.mxu0 0.0
    %593 = vmatpush1.xpose.msra.mxu0 0.0
    %594 = vmatprep.subr.mxu0 0.0
    %595 = vmatpush1.xpose.msra.mxu0 0.0
    %596 = vmatprep.subr.mxu0 0.0
    %597 = vmatpush1.xpose.msra.mxu0 0.0
    %598 = vmatprep.subr.mxu0 0.0
    %599 = vmatpush1.xpose.msra.mxu0 0.0
    %600 = vmatprep.subr.mxu0 0.0
    %601 = vmatpush1.xpose.msra.mxu0 0.0
    %602 = vmatprep.subr.mxu0 0.0
    %v603 = vand.u32 %v494, 4294901760
    %v604 = vsub.f32 %v494, %v603
    %v605 = vand.u32 %v604, 4294901760
    %v606 = vsub.f32 %v604, %v605
    %v607 = vand.u32 %v606, 4294901760
    %608 = vmatpush1.xpose.msra.mxu0 %v607
    %609 = vmatprep.subr.mxu0 0.0
    %610 = vmatpush2.xpose.msra.mxu0 0.0
    %611 = vmatprep.subr.mxu0 0.0
    %612 = vmatpush2.xpose.msra.mxu0 0.0
    %613 = vmatprep.subr.mxu0 0.0
    %614 = vmatpush2.xpose.msra.mxu0 0.0
    %615 = vmatprep.subr.mxu0 0.0
    %616 = vmatpush2.xpose.msra.mxu0 0.0
    %617 = vmatprep.subr.mxu0 0.0
    %618 = vmatpush2.xpose.msra.mxu0 0.0
    %619 = vmatprep.subr.mxu0 0.0
    %620 = vmatpush2.xpose.msra.mxu0 0.0
    %621 = vmatprep.subr.mxu0 0.0
    %622 = vmatpush2.xpose.msra.mxu0 0.0
    %623 = vmatprep.subr.mxu0 0.0
    %624 = vmatpush2.xpose.msra.mxu0 0.0
    %625 = vmatprep.subr.mxu0 0.0
    %626 = vmatpush2.xpose.msra.mxu0 0.0
    %627 = vmatprep.subr.mxu0 0.0
    %628 = vmatpush2.xpose.msra.mxu0 0.0
    %629 = vmatprep.subr.mxu0 0.0
    %630 = vmatpush2.xpose.msra.mxu0 0.0
    %631 = vmatprep.subr.mxu0 0.0
    %632 = vmatpush2.xpose.msra.mxu0 0.0
    %633 = vmatprep.subr.mxu0 0.0
    %634 = vmatpush2.xpose.msra.mxu0 0.0
    %635 = vmatprep.subr.mxu0 0.0
    %636 = vmatpush2.xpose.msra.mxu0 0.0
    %637 = vmatprep.subr.mxu0 0.0
    %638 = vmatpush2.xpose.msra.mxu0 0.0
    %639 = vmatprep.subr.mxu0 0.0
    %640 = vmatpush2.xpose.msra.mxu0 0.0
    %641 = vmatprep.mubr.f32.mxu0 0.0
    %v642 = vand.u32 %v41, 4294901760
    %643 = vmatmul.mubr.f32.gmra.mxu0 %v642
    %v644 = vpop.f32.mrf.mxu0
    %v645 = vadd.f32 %v569, %v644
    %v646 = vpop.f32.mrf.mxu0
    %647 = vdwg.mxu0
    %648 = vmatprep.subr.mxu0 0.0
    %649 = vmatpush1.xpose.msra.mxu0 0.0
    %650 = vmatprep.subr.mxu0 0.0
    %651 = vmatpush1.xpose.msra.mxu0 0.0
    %652 = vmatprep.subr.mxu0 0.0
    %653 = vmatpush1.xpose.msra.mxu0 0.0
    %654 = vmatprep.subr.mxu0 0.0
    %655 = vmatpush1.xpose.msra.mxu0 0.0
    %656 = vmatprep.subr.mxu0 0.0
    %657 = vmatpush1.xpose.msra.mxu0 0.0
    %658 = vmatprep.subr.mxu0 0.0
    %659 = vmatpush1.xpose.msra.mxu0 0.0
    %660 = vmatprep.subr.mxu0 0.0
    %661 = vmatpush1.xpose.msra.mxu0 0.0
    %662 = vmatprep.subr.mxu0 0.0
    %663 = vmatpush1.xpose.msra.mxu0 0.0
    %664 = vmatprep.subr.mxu0 0.0
    %665 = vmatpush1.xpose.msra.mxu0 0.0
    %666 = vmatprep.subr.mxu0 0.0
    %667 = vmatpush1.xpose.msra.mxu0 0.0
    %668 = vmatprep.subr.mxu0 0.0
    %669 = vmatpush1.xpose.msra.mxu0 0.0
    %670 = vmatprep.subr.mxu0 0.0
    %671 = vmatpush1.xpose.msra.mxu0 0.0
    %672 = vmatprep.subr.mxu0 0.0
    %673 = vmatpush1.xpose.msra.mxu0 0.0
    %674 = vmatprep.subr.mxu0 0.0
    %675 = vmatpush1.xpose.msra.mxu0 0.0
    %676 = vmatprep.subr.mxu0 0.0
    %677 = vmatpush1.xpose.msra.mxu0 0.0
    %678 = vmatprep.subr.mxu0 0.0
    %v679 = vand.u32 %v494, 4294901760
    %v680 = vsub.f32 %v494, %v679
    %681 = vmatpush1.xpose.msra.mxu0 %v680
    %682 = vmatprep.subr.mxu0 0.0
    %683 = vmatpush2.xpose.msra.mxu0 0.0
    %684 = vmatprep.subr.mxu0 0.0
    %685 = vmatpush2.xpose.msra.mxu0 0.0
    %686 = vmatprep.subr.mxu0 0.0
    %687 = vmatpush2.xpose.msra.mxu0 0.0
    %688 = vmatprep.subr.mxu0 0.0
    %689 = vmatpush2.xpose.msra.mxu0 0.0
    %690 = vmatprep.subr.mxu0 0.0
    %691 = vmatpush2.xpose.msra.mxu0 0.0
    %692 = vmatprep.subr.mxu0 0.0
    %693 = vmatpush2.xpose.msra.mxu0 0.0
    %694 = vmatprep.subr.mxu0 0.0
    %695 = vmatpush2.xpose.msra.mxu0 0.0
    %696 = vmatprep.subr.mxu0 0.0
    %697 = vmatpush2.xpose.msra.mxu0 0.0
    %698 = vmatprep.subr.mxu0 0.0
    %699 = vmatpush2.xpose.msra.mxu0 0.0
    %700 = vmatprep.subr.mxu0 0.0
    %701 = vmatpush2.xpose.msra.mxu0 0.0
    %702 = vmatprep.subr.mxu0 0.0
    %703 = vmatpush2.xpose.msra.mxu0 0.0
    %704 = vmatprep.subr.mxu0 0.0
    %705 = vmatpush2.xpose.msra.mxu0 0.0
    %706 = vmatprep.subr.mxu0 0.0
    %707 = vmatpush2.xpose.msra.mxu0 0.0
    %708 = vmatprep.subr.mxu0 0.0
    %709 = vmatpush2.xpose.msra.mxu0 0.0
    %710 = vmatprep.subr.mxu0 0.0
    %711 = vmatpush2.xpose.msra.mxu0 0.0
    %712 = vmatprep.subr.mxu0 0.0
    %713 = vmatpush2.xpose.msra.mxu0 0.0
    %714 = vmatprep.mubr.f32.mxu0 0.0
    %v715 = vand.u32 %v41, 4294901760
    %v716 = vsub.f32 %v41, %v715
    %717 = vmatmul.mubr.f32.gmra.mxu0 %v716
    %v718 = vpop.f32.mrf.mxu0
    %v719 = vadd.f32 %v645, %v718
    %v720 = vpop.f32.mrf.mxu0
    %721 = vdwg.mxu0
    %722 = vmatprep.subr.mxu0 0.0
    %723 = vmatpush1.xpose.msra.mxu0 0.0
    %724 = vmatprep.subr.mxu0 0.0
    %725 = vmatpush1.xpose.msra.mxu0 0.0
    %726 = vmatprep.subr.mxu0 0.0
    %727 = vmatpush1.xpose.msra.mxu0 0.0
    %728 = vmatprep.subr.mxu0 0.0
    %729 = vmatpush1.xpose.msra.mxu0 0.0
    %730 = vmatprep.subr.mxu0 0.0
    %731 = vmatpush1.xpose.msra.mxu0 0.0
    %732 = vmatprep.subr.mxu0 0.0
    %733 = vmatpush1.xpose.msra.mxu0 0.0
    %734 = vmatprep.subr.mxu0 0.0
    %735 = vmatpush1.xpose.msra.mxu0 0.0
    %736 = vmatprep.subr.mxu0 0.0
    %737 = vmatpush1.xpose.msra.mxu0 0.0
    %738 = vmatprep.subr.mxu0 0.0
    %739 = vmatpush1.xpose.msra.mxu0 0.0
    %740 = vmatprep.subr.mxu0 0.0
    %741 = vmatpush1.xpose.msra.mxu0 0.0
    %742 = vmatprep.subr.mxu0 0.0
    %743 = vmatpush1.xpose.msra.mxu0 0.0
    %744 = vmatprep.subr.mxu0 0.0
    %745 = vmatpush1.xpose.msra.mxu0 0.0
    %746 = vmatprep.subr.mxu0 0.0
    %747 = vmatpush1.xpose.msra.mxu0 0.0
    %748 = vmatprep.subr.mxu0 0.0
    %749 = vmatpush1.xpose.msra.mxu0 0.0
    %750 = vmatprep.subr.mxu0 0.0
    %751 = vmatpush1.xpose.msra.mxu0 0.0
    %752 = vmatprep.subr.mxu0 0.0
    %v753 = vand.u32 %v494, 4294901760
    %754 = vmatpush1.xpose.msra.mxu0 %v753
    %755 = vmatprep.subr.mxu0 0.0
    %756 = vmatpush2.xpose.msra.mxu0 0.0
    %757 = vmatprep.subr.mxu0 0.0
    %758 = vmatpush2.xpose.msra.mxu0 0.0
    %759 = vmatprep.subr.mxu0 0.0
    %760 = vmatpush2.xpose.msra.mxu0 0.0
    %761 = vmatprep.subr.mxu0 0.0
    %762 = vmatpush2.xpose.msra.mxu0 0.0
    %763 = vmatprep.subr.mxu0 0.0
    %764 = vmatpush2.xpose.msra.mxu0 0.0
    %765 = vmatprep.subr.mxu0 0.0
    %766 = vmatpush2.xpose.msra.mxu0 0.0
    %767 = vmatprep.subr.mxu0 0.0
    %768 = vmatpush2.xpose.msra.mxu0 0.0
    %769 = vmatprep.subr.mxu0 0.0
    %770 = vmatpush2.xpose.msra.mxu0 0.0
    %771 = vmatprep.subr.mxu0 0.0
    %772 = vmatpush2.xpose.msra.mxu0 0.0
    %773 = vmatprep.subr.mxu0 0.0
    %774 = vmatpush2.xpose.msra.mxu0 0.0
    %775 = vmatprep.subr.mxu0 0.0
    %776 = vmatpush2.xpose.msra.mxu0 0.0
    %777 = vmatprep.subr.mxu0 0.0
    %778 = vmatpush2.xpose.msra.mxu0 0.0
    %779 = vmatprep.subr.mxu0 0.0
    %780 = vmatpush2.xpose.msra.mxu0 0.0
    %781 = vmatprep.subr.mxu0 0.0
    %782 = vmatpush2.xpose.msra.mxu0 0.0
    %783 = vmatprep.subr.mxu0 0.0
    %784 = vmatpush2.xpose.msra.mxu0 0.0
    %785 = vmatprep.subr.mxu0 0.0
    %786 = vmatpush2.xpose.msra.mxu0 0.0
    %787 = vmatprep.mubr.f32.mxu0 0.0
    %v788 = vand.u32 %v41, 4294901760
    %v789 = vsub.f32 %v41, %v788
    %v790 = vand.u32 %v789, 4294901760
    %791 = vmatmul.mubr.f32.gmra.mxu0 %v790
    %v792 = vpop.f32.mrf.mxu0
    %v793 = vadd.f32 %v719, %v792
    %v794 = vpop.f32.mrf.mxu0
    %795 = vdwg.mxu0
    %796 = vmatprep.subr.mxu0 0.0
    %797 = vmatpush1.xpose.msra.mxu0 0.0
    %798 = vmatprep.subr.mxu0 0.0
    %799 = vmatpush1.xpose.msra.mxu0 0.0
    %800 = vmatprep.subr.mxu0 0.0
    %801 = vmatpush1.xpose.msra.mxu0 0.0
    %802 = vmatprep.subr.mxu0 0.0
    %803 = vmatpush1.xpose.msra.mxu0 0.0
    %804 = vmatprep.subr.mxu0 0.0
    %805 = vmatpush1.xpose.msra.mxu0 0.0
    %806 = vmatprep.subr.mxu0 0.0
    %807 = vmatpush1.xpose.msra.mxu0 0.0
    %808 = vmatprep.subr.mxu0 0.0
    %809 = vmatpush1.xpose.msra.mxu0 0.0
    %810 = vmatprep.subr.mxu0 0.0
    %811 = vmatpush1.xpose.msra.mxu0 0.0
    %812 = vmatprep.subr.mxu0 0.0
    %813 = vmatpush1.xpose.msra.mxu0 0.0
    %814 = vmatprep.subr.mxu0 0.0
    %815 = vmatpush1.xpose.msra.mxu0 0.0
    %816 = vmatprep.subr.mxu0 0.0
    %817 = vmatpush1.xpose.msra.mxu0 0.0
    %818 = vmatprep.subr.mxu0 0.0
    %819 = vmatpush1.xpose.msra.mxu0 0.0
    %820 = vmatprep.subr.mxu0 0.0
    %821 = vmatpush1.xpose.msra.mxu0 0.0
    %822 = vmatprep.subr.mxu0 0.0
    %823 = vmatpush1.xpose.msra.mxu0 0.0
    %824 = vmatprep.subr.mxu0 0.0
    %825 = vmatpush1.xpose.msra.mxu0 0.0
    %826 = vmatprep.subr.mxu0 0.0
    %v827 = vand.u32 %v494, 4294901760
    %v828 = vsub.f32 %v494, %v827
    %v829 = vand.u32 %v828, 4294901760
    %830 = vmatpush1.xpose.msra.mxu0 %v829
    %831 = vmatprep.subr.mxu0 0.0
    %832 = vmatpush2.xpose.msra.mxu0 0.0
    %833 = vmatprep.subr.mxu0 0.0
    %834 = vmatpush2.xpose.msra.mxu0 0.0
    %835 = vmatprep.subr.mxu0 0.0
    %836 = vmatpush2.xpose.msra.mxu0 0.0
    %837 = vmatprep.subr.mxu0 0.0
    %838 = vmatpush2.xpose.msra.mxu0 0.0
    %839 = vmatprep.subr.mxu0 0.0
    %840 = vmatpush2.xpose.msra.mxu0 0.0
    %841 = vmatprep.subr.mxu0 0.0
    %842 = vmatpush2.xpose.msra.mxu0 0.0
    %843 = vmatprep.subr.mxu0 0.0
    %844 = vmatpush2.xpose.msra.mxu0 0.0
    %845 = vmatprep.subr.mxu0 0.0
    %846 = vmatpush2.xpose.msra.mxu0 0.0
    %847 = vmatprep.subr.mxu0 0.0
    %848 = vmatpush2.xpose.msra.mxu0 0.0
    %849 = vmatprep.subr.mxu0 0.0
    %850 = vmatpush2.xpose.msra.mxu0 0.0
    %851 = vmatprep.subr.mxu0 0.0
    %852 = vmatpush2.xpose.msra.mxu0 0.0
    %853 = vmatprep.subr.mxu0 0.0
    %854 = vmatpush2.xpose.msra.mxu0 0.0
    %855 = vmatprep.subr.mxu0 0.0
    %856 = vmatpush2.xpose.msra.mxu0 0.0
    %857 = vmatprep.subr.mxu0 0.0
    %858 = vmatpush2.xpose.msra.mxu0 0.0
    %859 = vmatprep.subr.mxu0 0.0
    %860 = vmatpush2.xpose.msra.mxu0 0.0
    %861 = vmatprep.subr.mxu0 0.0
    %862 = vmatpush2.xpose.msra.mxu0 0.0
    %863 = vmatprep.mubr.f32.mxu0 0.0
    %v864 = vand.u32 %v41, 4294901760
    %865 = vmatmul.mubr.f32.gmra.mxu0 %v864
    %v866 = vpop.f32.mrf.mxu0
    %v867 = vadd.f32 %v793, %v866
    %v868 = vpop.f32.mrf.mxu0
    %869 = vdwg.mxu0
    %870 = vmatprep.subr.mxu0 0.0
    %871 = vmatpush1.xpose.msra.mxu0 0.0
    %872 = vmatprep.subr.mxu0 0.0
    %873 = vmatpush1.xpose.msra.mxu0 0.0
    %874 = vmatprep.subr.mxu0 0.0
    %875 = vmatpush1.xpose.msra.mxu0 0.0
    %876 = vmatprep.subr.mxu0 0.0
    %877 = vmatpush1.xpose.msra.mxu0 0.0
    %878 = vmatprep.subr.mxu0 0.0
    %879 = vmatpush1.xpose.msra.mxu0 0.0
    %880 = vmatprep.subr.mxu0 0.0
    %881 = vmatpush1.xpose.msra.mxu0 0.0
    %882 = vmatprep.subr.mxu0 0.0
    %883 = vmatpush1.xpose.msra.mxu0 0.0
    %884 = vmatprep.subr.mxu0 0.0
    %885 = vmatpush1.xpose.msra.mxu0 0.0
    %886 = vmatprep.subr.mxu0 0.0
    %887 = vmatpush1.xpose.msra.mxu0 0.0
    %888 = vmatprep.subr.mxu0 0.0
    %889 = vmatpush1.xpose.msra.mxu0 0.0
    %890 = vmatprep.subr.mxu0 0.0
    %891 = vmatpush1.xpose.msra.mxu0 0.0
    %892 = vmatprep.subr.mxu0 0.0
    %893 = vmatpush1.xpose.msra.mxu0 0.0
    %894 = vmatprep.subr.mxu0 0.0
    %895 = vmatpush1.xpose.msra.mxu0 0.0
    %896 = vmatprep.subr.mxu0 0.0
    %897 = vmatpush1.xpose.msra.mxu0 0.0
    %898 = vmatprep.subr.mxu0 0.0
    %899 = vmatpush1.xpose.msra.mxu0 0.0
    %900 = vmatprep.subr.mxu0 0.0
    %v901 = vand.u32 %v494, 4294901760
    %902 = vmatpush1.xpose.msra.mxu0 %v901
    %903 = vmatprep.subr.mxu0 0.0
    %904 = vmatpush2.xpose.msra.mxu0 0.0
    %905 = vmatprep.subr.mxu0 0.0
    %906 = vmatpush2.xpose.msra.mxu0 0.0
    %907 = vmatprep.subr.mxu0 0.0
    %908 = vmatpush2.xpose.msra.mxu0 0.0
    %909 = vmatprep.subr.mxu0 0.0
    %910 = vmatpush2.xpose.msra.mxu0 0.0
    %911 = vmatprep.subr.mxu0 0.0
    %912 = vmatpush2.xpose.msra.mxu0 0.0
    %913 = vmatprep.subr.mxu0 0.0
    %914 = vmatpush2.xpose.msra.mxu0 0.0
    %915 = vmatprep.subr.mxu0 0.0
    %916 = vmatpush2.xpose.msra.mxu0 0.0
    %917 = vmatprep.subr.mxu0 0.0
    %918 = vmatpush2.xpose.msra.mxu0 0.0
    %919 = vmatprep.subr.mxu0 0.0
    %920 = vmatpush2.xpose.msra.mxu0 0.0
    %921 = vmatprep.subr.mxu0 0.0
    %922 = vmatpush2.xpose.msra.mxu0 0.0
    %923 = vmatprep.subr.mxu0 0.0
    %924 = vmatpush2.xpose.msra.mxu0 0.0
    %925 = vmatprep.subr.mxu0 0.0
    %926 = vmatpush2.xpose.msra.mxu0 0.0
    %927 = vmatprep.subr.mxu0 0.0
    %928 = vmatpush2.xpose.msra.mxu0 0.0
    %929 = vmatprep.subr.mxu0 0.0
    %930 = vmatpush2.xpose.msra.mxu0 0.0
    %931 = vmatprep.subr.mxu0 0.0
    %932 = vmatpush2.xpose.msra.mxu0 0.0
    %933 = vmatprep.subr.mxu0 0.0
    %934 = vmatpush2.xpose.msra.mxu0 0.0
    %935 = vmatprep.mubr.f32.mxu0 0.0
    %v936 = vand.u32 %v41, 4294901760
    %937 = vmatmul.mubr.f32.gmra.mxu0 %v936
    %v938 = vpop.f32.mrf.mxu0
    %v939 = vadd.f32 %v867, %v938
    %v940 = vpop.f32.mrf.mxu0
    %941 = vdwg.mxu0
    %v942 = vmul.f32 %v37, %v37
    %v944 = vsel %vm39, %v942, 0
    %946 = vmatprep.subr.mxu0 0.0
    %947 = vmatpush1.xpose.msra.mxu0 0.0
    %948 = vmatprep.subr.mxu0 0.0
    %949 = vmatpush1.xpose.msra.mxu0 0.0
    %950 = vmatprep.subr.mxu0 0.0
    %951 = vmatpush1.xpose.msra.mxu0 0.0
    %952 = vmatprep.subr.mxu0 0.0
    %953 = vmatpush1.xpose.msra.mxu0 0.0
    %954 = vmatprep.subr.mxu0 0.0
    %955 = vmatpush1.xpose.msra.mxu0 0.0
    %956 = vmatprep.subr.mxu0 0.0
    %957 = vmatpush1.xpose.msra.mxu0 0.0
    %958 = vmatprep.subr.mxu0 0.0
    %959 = vmatpush1.xpose.msra.mxu0 0.0
    %960 = vmatprep.subr.mxu0 0.0
    %961 = vmatpush1.xpose.msra.mxu0 0.0
    %962 = vmatprep.subr.mxu0 0.0
    %963 = vmatpush1.xpose.msra.mxu0 0.0
    %964 = vmatprep.subr.mxu0 0.0
    %965 = vmatpush1.xpose.msra.mxu0 0.0
    %966 = vmatprep.subr.mxu0 0.0
    %967 = vmatpush1.xpose.msra.mxu0 0.0
    %968 = vmatprep.subr.mxu0 0.0
    %969 = vmatpush1.xpose.msra.mxu0 0.0
    %970 = vmatprep.subr.mxu0 0.0
    %971 = vmatpush1.xpose.msra.mxu0 0.0
    %972 = vmatprep.subr.mxu0 0.0
    %973 = vmatpush1.xpose.msra.mxu0 0.0
    %974 = vmatprep.subr.mxu0 0.0
    %975 = vmatpush1.xpose.msra.mxu0 0.0
    %976 = vmatprep.subr.mxu0 0.0
    %v977 = vand.u32 %v944, 4294901760
    %978 = vmatpush1.xpose.msra.mxu0 %v977
    %979 = vmatprep.subr.mxu0 0.0
    %980 = vmatpush2.xpose.msra.mxu0 0.0
    %981 = vmatprep.subr.mxu0 0.0
    %982 = vmatpush2.xpose.msra.mxu0 0.0
    %983 = vmatprep.subr.mxu0 0.0
    %984 = vmatpush2.xpose.msra.mxu0 0.0
    %985 = vmatprep.subr.mxu0 0.0
    %986 = vmatpush2.xpose.msra.mxu0 0.0
    %987 = vmatprep.subr.mxu0 0.0
    %988 = vmatpush2.xpose.msra.mxu0 0.0
    %989 = vmatprep.subr.mxu0 0.0
    %990 = vmatpush2.xpose.msra.mxu0 0.0
    %991 = vmatprep.subr.mxu0 0.0
    %992 = vmatpush2.xpose.msra.mxu0 0.0
    %993 = vmatprep.subr.mxu0 0.0
    %994 = vmatpush2.xpose.msra.mxu0 0.0
    %995 = vmatprep.subr.mxu0 0.0
    %996 = vmatpush2.xpose.msra.mxu0 0.0
    %997 = vmatprep.subr.mxu0 0.0
    %998 = vmatpush2.xpose.msra.mxu0 0.0
    %999 = vmatprep.subr.mxu0 0.0
    %1000 = vmatpush2.xpose.msra.mxu0 0.0
    %1001 = vmatprep.subr.mxu0 0.0
    %1002 = vmatpush2.xpose.msra.mxu0 0.0
    %1003 = vmatprep.subr.mxu0 0.0
    %1004 = vmatpush2.xpose.msra.mxu0 0.0
    %1005 = vmatprep.subr.mxu0 0.0
    %1006 = vmatpush2.xpose.msra.mxu0 0.0
    %1007 = vmatprep.subr.mxu0 0.0
    %1008 = vmatpush2.xpose.msra.mxu0 0.0
    %1009 = vmatprep.subr.mxu0 0.0
    %1010 = vmatpush2.xpose.msra.mxu0 0.0
    %1011 = vmatprep.mubr.f32.mxu0 0.0
    %v1012 = vand.u32 %v41, 4294901760
    %v1013 = vsub.f32 %v41, %v1012
    %v1014 = vand.u32 %v1013, 4294901760
    %v1015 = vsub.f32 %v1013, %v1014
    %v1016 = vand.u32 %v1015, 4294901760
    %1017 = vmatmul.mubr.f32.gmra.mxu0 %v1016
    %v1018 = vpop.f32.mrf.mxu0
    %v1019 = vadd.f32 0.0, %v1018
    %v1020 = vpop.f32.mrf.mxu0
    %1021 = vdwg.mxu0
    %1022 = vmatprep.subr.mxu0 0.0
    %1023 = vmatpush1.xpose.msra.mxu0 0.0
    %1024 = vmatprep.subr.mxu0 0.0
    %1025 = vmatpush1.xpose.msra.mxu0 0.0
    %1026 = vmatprep.subr.mxu0 0.0
    %1027 = vmatpush1.xpose.msra.mxu0 0.0
    %1028 = vmatprep.subr.mxu0 0.0
    %1029 = vmatpush1.xpose.msra.mxu0 0.0
    %1030 = vmatprep.subr.mxu0 0.0
    %1031 = vmatpush1.xpose.msra.mxu0 0.0
    %1032 = vmatprep.subr.mxu0 0.0
    %1033 = vmatpush1.xpose.msra.mxu0 0.0
    %1034 = vmatprep.subr.mxu0 0.0
    %1035 = vmatpush1.xpose.msra.mxu0 0.0
    %1036 = vmatprep.subr.mxu0 0.0
    %1037 = vmatpush1.xpose.msra.mxu0 0.0
    %1038 = vmatprep.subr.mxu0 0.0
    %1039 = vmatpush1.xpose.msra.mxu0 0.0
    %1040 = vmatprep.subr.mxu0 0.0
    %1041 = vmatpush1.xpose.msra.mxu0 0.0
    %1042 = vmatprep.subr.mxu0 0.0
    %1043 = vmatpush1.xpose.msra.mxu0 0.0
    %1044 = vmatprep.subr.mxu0 0.0
    %1045 = vmatpush1.xpose.msra.mxu0 0.0
    %1046 = vmatprep.subr.mxu0 0.0
    %1047 = vmatpush1.xpose.msra.mxu0 0.0
    %1048 = vmatprep.subr.mxu0 0.0
    %1049 = vmatpush1.xpose.msra.mxu0 0.0
    %1050 = vmatprep.subr.mxu0 0.0
    %1051 = vmatpush1.xpose.msra.mxu0 0.0
    %1052 = vmatprep.subr.mxu0 0.0
    %v1053 = vand.u32 %v944, 4294901760
    %v1054 = vsub.f32 %v944, %v1053
    %v1055 = vand.u32 %v1054, 4294901760
    %v1056 = vsub.f32 %v1054, %v1055
    %v1057 = vand.u32 %v1056, 4294901760
    %1058 = vmatpush1.xpose.msra.mxu0 %v1057
    %1059 = vmatprep.subr.mxu0 0.0
    %1060 = vmatpush2.xpose.msra.mxu0 0.0
    %1061 = vmatprep.subr.mxu0 0.0
    %1062 = vmatpush2.xpose.msra.mxu0 0.0
    %1063 = vmatprep.subr.mxu0 0.0
    %1064 = vmatpush2.xpose.msra.mxu0 0.0
    %1065 = vmatprep.subr.mxu0 0.0
    %1066 = vmatpush2.xpose.msra.mxu0 0.0
    %1067 = vmatprep.subr.mxu0 0.0
    %1068 = vmatpush2.xpose.msra.mxu0 0.0
    %1069 = vmatprep.subr.mxu0 0.0
    %1070 = vmatpush2.xpose.msra.mxu0 0.0
    %1071 = vmatprep.subr.mxu0 0.0
    %1072 = vmatpush2.xpose.msra.mxu0 0.0
    %1073 = vmatprep.subr.mxu0 0.0
    %1074 = vmatpush2.xpose.msra.mxu0 0.0
    %1075 = vmatprep.subr.mxu0 0.0
    %1076 = vmatpush2.xpose.msra.mxu0 0.0
    %1077 = vmatprep.subr.mxu0 0.0
    %1078 = vmatpush2.xpose.msra.mxu0 0.0
    %1079 = vmatprep.subr.mxu0 0.0
    %1080 = vmatpush2.xpose.msra.mxu0 0.0
    %1081 = vmatprep.subr.mxu0 0.0
    %1082 = vmatpush2.xpose.msra.mxu0 0.0
    %1083 = vmatprep.subr.mxu0 0.0
    %1084 = vmatpush2.xpose.msra.mxu0 0.0
    %1085 = vmatprep.subr.mxu0 0.0
    %1086 = vmatpush2.xpose.msra.mxu0 0.0
    %1087 = vmatprep.subr.mxu0 0.0
    %1088 = vmatpush2.xpose.msra.mxu0 0.0
    %1089 = vmatprep.subr.mxu0 0.0
    %1090 = vmatpush2.xpose.msra.mxu0 0.0
    %1091 = vmatprep.mubr.f32.mxu0 0.0
    %v1092 = vand.u32 %v41, 4294901760
    %1093 = vmatmul.mubr.f32.gmra.mxu0 %v1092
    %v1094 = vpop.f32.mrf.mxu0
    %v1095 = vadd.f32 %v1019, %v1094
    %v1096 = vpop.f32.mrf.mxu0
    %1097 = vdwg.mxu0
    %1098 = vmatprep.subr.mxu0 0.0
    %1099 = vmatpush1.xpose.msra.mxu0 0.0
    %1100 = vmatprep.subr.mxu0 0.0
    %1101 = vmatpush1.xpose.msra.mxu0 0.0
    %1102 = vmatprep.subr.mxu0 0.0
    %1103 = vmatpush1.xpose.msra.mxu0 0.0
    %1104 = vmatprep.subr.mxu0 0.0
    %1105 = vmatpush1.xpose.msra.mxu0 0.0
    %1106 = vmatprep.subr.mxu0 0.0
    %1107 = vmatpush1.xpose.msra.mxu0 0.0
    %1108 = vmatprep.subr.mxu0 0.0
    %1109 = vmatpush1.xpose.msra.mxu0 0.0
    %1110 = vmatprep.subr.mxu0 0.0
    %1111 = vmatpush1.xpose.msra.mxu0 0.0
    %1112 = vmatprep.subr.mxu0 0.0
    %1113 = vmatpush1.xpose.msra.mxu0 0.0
    %1114 = vmatprep.subr.mxu0 0.0
    %1115 = vmatpush1.xpose.msra.mxu0 0.0
    %1116 = vmatprep.subr.mxu0 0.0
    %1117 = vmatpush1.xpose.msra.mxu0 0.0
    %1118 = vmatprep.subr.mxu0 0.0
    %1119 = vmatpush1.xpose.msra.mxu0 0.0
    %1120 = vmatprep.subr.mxu0 0.0
    %1121 = vmatpush1.xpose.msra.mxu0 0.0
    %1122 = vmatprep.subr.mxu0 0.0
    %1123 = vmatpush1.xpose.msra.mxu0 0.0
    %1124 = vmatprep.subr.mxu0 0.0
    %1125 = vmatpush1.xpose.msra.mxu0 0.0
    %1126 = vmatprep.subr.mxu0 0.0
    %1127 = vmatpush1.xpose.msra.mxu0 0.0
    %1128 = vmatprep.subr.mxu0 0.0
    %v1129 = vand.u32 %v944, 4294901760
    %v1130 = vsub.f32 %v944, %v1129
    %1131 = vmatpush1.xpose.msra.mxu0 %v1130
    %1132 = vmatprep.subr.mxu0 0.0
    %1133 = vmatpush2.xpose.msra.mxu0 0.0
    %1134 = vmatprep.subr.mxu0 0.0
    %1135 = vmatpush2.xpose.msra.mxu0 0.0
    %1136 = vmatprep.subr.mxu0 0.0
    %1137 = vmatpush2.xpose.msra.mxu0 0.0
    %1138 = vmatprep.subr.mxu0 0.0
    %1139 = vmatpush2.xpose.msra.mxu0 0.0
    %1140 = vmatprep.subr.mxu0 0.0
    %1141 = vmatpush2.xpose.msra.mxu0 0.0
    %1142 = vmatprep.subr.mxu0 0.0
    %1143 = vmatpush2.xpose.msra.mxu0 0.0
    %1144 = vmatprep.subr.mxu0 0.0
    %1145 = vmatpush2.xpose.msra.mxu0 0.0
    %1146 = vmatprep.subr.mxu0 0.0
    %1147 = vmatpush2.xpose.msra.mxu0 0.0
    %1148 = vmatprep.subr.mxu0 0.0
    %1149 = vmatpush2.xpose.msra.mxu0 0.0
    %1150 = vmatprep.subr.mxu0 0.0
    %1151 = vmatpush2.xpose.msra.mxu0 0.0
    %1152 = vmatprep.subr.mxu0 0.0
    %1153 = vmatpush2.xpose.msra.mxu0 0.0
    %1154 = vmatprep.subr.mxu0 0.0
    %1155 = vmatpush2.xpose.msra.mxu0 0.0
    %1156 = vmatprep.subr.mxu0 0.0
    %1157 = vmatpush2.xpose.msra.mxu0 0.0
    %1158 = vmatprep.subr.mxu0 0.0
    %1159 = vmatpush2.xpose.msra.mxu0 0.0
    %1160 = vmatprep.subr.mxu0 0.0
    %1161 = vmatpush2.xpose.msra.mxu0 0.0
    %1162 = vmatprep.subr.mxu0 0.0
    %1163 = vmatpush2.xpose.msra.mxu0 0.0
    %1164 = vmatprep.mubr.f32.mxu0 0.0
    %v1165 = vand.u32 %v41, 4294901760
    %v1166 = vsub.f32 %v41, %v1165
    %1167 = vmatmul.mubr.f32.gmra.mxu0 %v1166
    %v1168 = vpop.f32.mrf.mxu0
    %v1169 = vadd.f32 %v1095, %v1168
    %v1170 = vpop.f32.mrf.mxu0
    %1171 = vdwg.mxu0
    %1172 = vmatprep.subr.mxu0 0.0
    %1173 = vmatpush1.xpose.msra.mxu0 0.0
    %1174 = vmatprep.subr.mxu0 0.0
    %1175 = vmatpush1.xpose.msra.mxu0 0.0
    %1176 = vmatprep.subr.mxu0 0.0
    %1177 = vmatpush1.xpose.msra.mxu0 0.0
    %1178 = vmatprep.subr.mxu0 0.0
    %1179 = vmatpush1.xpose.msra.mxu0 0.0
    %1180 = vmatprep.subr.mxu0 0.0
    %1181 = vmatpush1.xpose.msra.mxu0 0.0
    %1182 = vmatprep.subr.mxu0 0.0
    %1183 = vmatpush1.xpose.msra.mxu0 0.0
    %1184 = vmatprep.subr.mxu0 0.0
    %1185 = vmatpush1.xpose.msra.mxu0 0.0
    %1186 = vmatprep.subr.mxu0 0.0
    %1187 = vmatpush1.xpose.msra.mxu0 0.0
    %1188 = vmatprep.subr.mxu0 0.0
    %1189 = vmatpush1.xpose.msra.mxu0 0.0
    %1190 = vmatprep.subr.mxu0 0.0
    %1191 = vmatpush1.xpose.msra.mxu0 0.0
    %1192 = vmatprep.subr.mxu0 0.0
    %1193 = vmatpush1.xpose.msra.mxu0 0.0
    %1194 = vmatprep.subr.mxu0 0.0
    %1195 = vmatpush1.xpose.msra.mxu0 0.0
    %1196 = vmatprep.subr.mxu0 0.0
    %1197 = vmatpush1.xpose.msra.mxu0 0.0
    %1198 = vmatprep.subr.mxu0 0.0
    %1199 = vmatpush1.xpose.msra.mxu0 0.0
    %1200 = vmatprep.subr.mxu0 0.0
    %1201 = vmatpush1.xpose.msra.mxu0 0.0
    %1202 = vmatprep.subr.mxu0 0.0
    %v1203 = vand.u32 %v944, 4294901760
    %1204 = vmatpush1.xpose.msra.mxu0 %v1203
    %1205 = vmatprep.subr.mxu0 0.0
    %1206 = vmatpush2.xpose.msra.mxu0 0.0
    %1207 = vmatprep.subr.mxu0 0.0
    %1208 = vmatpush2.xpose.msra.mxu0 0.0
    %1209 = vmatprep.subr.mxu0 0.0
    %1210 = vmatpush2.xpose.msra.mxu0 0.0
    %1211 = vmatprep.subr.mxu0 0.0
    %1212 = vmatpush2.xpose.msra.mxu0 0.0
    %1213 = vmatprep.subr.mxu0 0.0
    %1214 = vmatpush2.xpose.msra.mxu0 0.0
    %1215 = vmatprep.subr.mxu0 0.0
    %1216 = vmatpush2.xpose.msra.mxu0 0.0
    %1217 = vmatprep.subr.mxu0 0.0
    %1218 = vmatpush2.xpose.msra.mxu0 0.0
    %1219 = vmatprep.subr.mxu0 0.0
    %1220 = vmatpush2.xpose.msra.mxu0 0.0
    %1221 = vmatprep.subr.mxu0 0.0
    %1222 = vmatpush2.xpose.msra.mxu0 0.0
    %1223 = vmatprep.subr.mxu0 0.0
    %1224 = vmatpush2.xpose.msra.mxu0 0.0
    %1225 = vmatprep.subr.mxu0 0.0
    %1226 = vmatpush2.xpose.msra.mxu0 0.0
    %1227 = vmatprep.subr.mxu0 0.0
    %1228 = vmatpush2.xpose.msra.mxu0 0.0
    %1229 = vmatprep.subr.mxu0 0.0
    %1230 = vmatpush2.xpose.msra.mxu0 0.0
    %1231 = vmatprep.subr.mxu0 0.0
    %1232 = vmatpush2.xpose.msra.mxu0 0.0
    %1233 = vmatprep.subr.mxu0 0.0
    %1234 = vmatpush2.xpose.msra.mxu0 0.0
    %1235 = vmatprep.subr.mxu0 0.0
    %1236 = vmatpush2.xpose.msra.mxu0 0.0
    %1237 = vmatprep.mubr.f32.mxu0 0.0
    %v1238 = vand.u32 %v41, 4294901760
    %v1239 = vsub.f32 %v41, %v1238
    %v1240 = vand.u32 %v1239, 4294901760
    %1241 = vmatmul.mubr.f32.gmra.mxu0 %v1240
    %v1242 = vpop.f32.mrf.mxu0
    %v1243 = vadd.f32 %v1169, %v1242
    %v1244 = vpop.f32.mrf.mxu0
    %1245 = vdwg.mxu0
    %1246 = vmatprep.subr.mxu0 0.0
    %1247 = vmatpush1.xpose.msra.mxu0 0.0
    %1248 = vmatprep.subr.mxu0 0.0
    %1249 = vmatpush1.xpose.msra.mxu0 0.0
    %1250 = vmatprep.subr.mxu0 0.0
    %1251 = vmatpush1.xpose.msra.mxu0 0.0
    %1252 = vmatprep.subr.mxu0 0.0
    %1253 = vmatpush1.xpose.msra.mxu0 0.0
    %1254 = vmatprep.subr.mxu0 0.0
    %1255 = vmatpush1.xpose.msra.mxu0 0.0
    %1256 = vmatprep.subr.mxu0 0.0
    %1257 = vmatpush1.xpose.msra.mxu0 0.0
    %1258 = vmatprep.subr.mxu0 0.0
    %1259 = vmatpush1.xpose.msra.mxu0 0.0
    %1260 = vmatprep.subr.mxu0 0.0
    %1261 = vmatpush1.xpose.msra.mxu0 0.0
    %1262 = vmatprep.subr.mxu0 0.0
    %1263 = vmatpush1.xpose.msra.mxu0 0.0
    %1264 = vmatprep.subr.mxu0 0.0
    %1265 = vmatpush1.xpose.msra.mxu0 0.0
    %1266 = vmatprep.subr.mxu0 0.0
    %1267 = vmatpush1.xpose.msra.mxu0 0.0
    %1268 = vmatprep.subr.mxu0 0.0
    %1269 = vmatpush1.xpose.msra.mxu0 0.0
    %1270 = vmatprep.subr.mxu0 0.0
    %1271 = vmatpush1.xpose.msra.mxu0 0.0
    %1272 = vmatprep.subr.mxu0 0.0
    %1273 = vmatpush1.xpose.msra.mxu0 0.0
    %1274 = vmatprep.subr.mxu0 0.0
    %1275 = vmatpush1.xpose.msra.mxu0 0.0
    %1276 = vmatprep.subr.mxu0 0.0
    %v1277 = vand.u32 %v944, 4294901760
    %v1278 = vsub.f32 %v944, %v1277
    %v1279 = vand.u32 %v1278, 4294901760
    %1280 = vmatpush1.xpose.msra.mxu0 %v1279
    %1281 = vmatprep.subr.mxu0 0.0
    %1282 = vmatpush2.xpose.msra.mxu0 0.0
    %1283 = vmatprep.subr.mxu0 0.0
    %1284 = vmatpush2.xpose.msra.mxu0 0.0
    %1285 = vmatprep.subr.mxu0 0.0
    %1286 = vmatpush2.xpose.msra.mxu0 0.0
    %1287 = vmatprep.subr.mxu0 0.0
    %1288 = vmatpush2.xpose.msra.mxu0 0.0
    %1289 = vmatprep.subr.mxu0 0.0
    %1290 = vmatpush2.xpose.msra.mxu0 0.0
    %1291 = vmatprep.subr.mxu0 0.0
    %1292 = vmatpush2.xpose.msra.mxu0 0.0
    %1293 = vmatprep.subr.mxu0 0.0
    %1294 = vmatpush2.xpose.msra.mxu0 0.0
    %1295 = vmatprep.subr.mxu0 0.0
    %1296 = vmatpush2.xpose.msra.mxu0 0.0
    %1297 = vmatprep.subr.mxu0 0.0
    %1298 = vmatpush2.xpose.msra.mxu0 0.0
    %1299 = vmatprep.subr.mxu0 0.0
    %1300 = vmatpush2.xpose.msra.mxu0 0.0
    %1301 = vmatprep.subr.mxu0 0.0
    %1302 = vmatpush2.xpose.msra.mxu0 0.0
    %1303 = vmatprep.subr.mxu0 0.0
    %1304 = vmatpush2.xpose.msra.mxu0 0.0
    %1305 = vmatprep.subr.mxu0 0.0
    %1306 = vmatpush2.xpose.msra.mxu0 0.0
    %1307 = vmatprep.subr.mxu0 0.0
    %1308 = vmatpush2.xpose.msra.mxu0 0.0
    %1309 = vmatprep.subr.mxu0 0.0
    %1310 = vmatpush2.xpose.msra.mxu0 0.0
    %1311 = vmatprep.subr.mxu0 0.0
    %1312 = vmatpush2.xpose.msra.mxu0 0.0
    %1313 = vmatprep.mubr.f32.mxu0 0.0
    %v1314 = vand.u32 %v41, 4294901760
    %1315 = vmatmul.mubr.f32.gmra.mxu0 %v1314
    %v1316 = vpop.f32.mrf.mxu0
    %v1317 = vadd.f32 %v1243, %v1316
    %v1318 = vpop.f32.mrf.mxu0
    %1319 = vdwg.mxu0
    %1320 = vmatprep.subr.mxu0 0.0
    %1321 = vmatpush1.xpose.msra.mxu0 0.0
    %1322 = vmatprep.subr.mxu0 0.0
    %1323 = vmatpush1.xpose.msra.mxu0 0.0
    %1324 = vmatprep.subr.mxu0 0.0
    %1325 = vmatpush1.xpose.msra.mxu0 0.0
    %1326 = vmatprep.subr.mxu0 0.0
    %1327 = vmatpush1.xpose.msra.mxu0 0.0
    %1328 = vmatprep.subr.mxu0 0.0
    %1329 = vmatpush1.xpose.msra.mxu0 0.0
    %1330 = vmatprep.subr.mxu0 0.0
    %1331 = vmatpush1.xpose.msra.mxu0 0.0
    %1332 = vmatprep.subr.mxu0 0.0
    %1333 = vmatpush1.xpose.msra.mxu0 0.0
    %1334 = vmatprep.subr.mxu0 0.0
    %1335 = vmatpush1.xpose.msra.mxu0 0.0
    %1336 = vmatprep.subr.mxu0 0.0
    %1337 = vmatpush1.xpose.msra.mxu0 0.0
    %1338 = vmatprep.subr.mxu0 0.0
    %1339 = vmatpush1.xpose.msra.mxu0 0.0
    %1340 = vmatprep.subr.mxu0 0.0
    %1341 = vmatpush1.xpose.msra.mxu0 0.0
    %1342 = vmatprep.subr.mxu0 0.0
    %1343 = vmatpush1.xpose.msra.mxu0 0.0
    %1344 = vmatprep.subr.mxu0 0.0
    %1345 = vmatpush1.xpose.msra.mxu0 0.0
    %1346 = vmatprep.subr.mxu0 0.0
    %1347 = vmatpush1.xpose.msra.mxu0 0.0
    %1348 = vmatprep.subr.mxu0 0.0
    %1349 = vmatpush1.xpose.msra.mxu0 0.0
    %1350 = vmatprep.subr.mxu0 0.0
    %v1351 = vand.u32 %v944, 4294901760
    %1352 = vmatpush1.xpose.msra.mxu0 %v1351
    %1353 = vmatprep.subr.mxu0 0.0
    %1354 = vmatpush2.xpose.msra.mxu0 0.0
    %1355 = vmatprep.subr.mxu0 0.0
    %1356 = vmatpush2.xpose.msra.mxu0 0.0
    %1357 = vmatprep.subr.mxu0 0.0
    %1358 = vmatpush2.xpose.msra.mxu0 0.0
    %1359 = vmatprep.subr.mxu0 0.0
    %1360 = vmatpush2.xpose.msra.mxu0 0.0
    %1361 = vmatprep.subr.mxu0 0.0
    %1362 = vmatpush2.xpose.msra.mxu0 0.0
    %1363 = vmatprep.subr.mxu0 0.0
    %1364 = vmatpush2.xpose.msra.mxu0 0.0
    %1365 = vmatprep.subr.mxu0 0.0
    %1366 = vmatpush2.xpose.msra.mxu0 0.0
    %1367 = vmatprep.subr.mxu0 0.0
    %1368 = vmatpush2.xpose.msra.mxu0 0.0
    %1369 = vmatprep.subr.mxu0 0.0
    %1370 = vmatpush2.xpose.msra.mxu0 0.0
    %1371 = vmatprep.subr.mxu0 0.0
    %1372 = vmatpush2.xpose.msra.mxu0 0.0
    %1373 = vmatprep.subr.mxu0 0.0
    %1374 = vmatpush2.xpose.msra.mxu0 0.0
    %1375 = vmatprep.subr.mxu0 0.0
    %1376 = vmatpush2.xpose.msra.mxu0 0.0
    %1377 = vmatprep.subr.mxu0 0.0
    %1378 = vmatpush2.xpose.msra.mxu0 0.0
    %1379 = vmatprep.subr.mxu0 0.0
    %1380 = vmatpush2.xpose.msra.mxu0 0.0
    %1381 = vmatprep.subr.mxu0 0.0
    %1382 = vmatpush2.xpose.msra.mxu0 0.0
    %1383 = vmatprep.subr.mxu0 0.0
    %1384 = vmatpush2.xpose.msra.mxu0 0.0
    %1385 = vmatprep.mubr.f32.mxu0 0.0
    %v1386 = vand.u32 %v41, 4294901760
    %1387 = vmatmul.mubr.f32.gmra.mxu0 %v1386
    %v1388 = vpop.f32.mrf.mxu0
    %v1389 = vadd.f32 %v1317, %v1388
    %v1390 = vpop.f32.mrf.mxu0
    %1391 = vdwg.mxu0
    %v1392 = vmax.f32 %v939, 1e-16
    %v1393 = vrsqrt.pop %v1392
    %v1394 = vmax.f32 %v1389, 1e-16
    %v1395 = vrsqrt.pop %v1394
    %v1396 = vmul.f32 %v1393, %v1395
    %v1397 = vmul.f32 %v489, %v1396
    %v1398 = vsub.f32 1.0, %v1397
    %vm1399 = vcmask 57344
    %1400 = vst.msk [vmem:[#allocation7] sm:$0x1] %vm1399, %v1398
    // Predicated region
    $region18: #{full_pair_comparer_cosine.1} parent=1 // pred_check
      _
    $region19: #{full_pair_comparer_cosine.1} parent=1 // pred_check_branch
      %1402 = sbr.rel (0) target = $region21
    $region20: #{full_pair_comparer_cosine.1} parent=1 // pred_region
      %s1404 = ssub.s32 16, 16
      %1405 = vsyncadd [#allocation4], %s1404
      %s1407 = sshll.u32 [#allocation7], 4
      %s1408 = int_to_ptr.vmem [resolvable:$true] %s1407
      %1410 = dma.vmem_to_hbm [thread:$0]  %s1408, 16, %s2, [#allocation4]
    $region21: #{full_pair_comparer_cosine.1} parent=1 // pred_fallthru
      _
    // Predicated region
    $region22: #{full_pair_comparer_cosine.1} parent=1 // pred_check
      _
    $region23: #{full_pair_comparer_cosine.1} parent=1 // pred_check_branch
      %1412 = sbr.rel (0) target = $region25
    $region24: #{full_pair_comparer_cosine.1} parent=1 // pred_region
      %1413 = dma.done [#allocation4], 16
    $region25: #{full_pair_comparer_cosine.1} parent=1 // pred_fallthru
      _
    %1414 = vsyncpa [#allocation3], 1
    %1415 = vsyncpa [#allocation6], 1
    %1416 = vsyncpa [#allocation4], 1

</llo_original>
